<compile_context>
chip_gen: v7x
topology: tpu7x:2x2x1
jax: 0.10.0
libtpu: 0.0.40
codegen_flags: <defaults>
</compile_context>

<pallas_src>
import functools

import jax
import jax.numpy as jnp
from jax import lax
from jax.experimental import pallas as pl
from jax.experimental.pallas import tpu as pltpu

TEMP = 0.07     # ContrastiveLoss(temp=0.07)
WEIGHT = 0.5    # ContrastiveLoss(weight=0.5)
EPS = 1e-8      # F.cosine_similarity eps


def _round_up(x, m):
    return (x + m - 1) // m * m


def _vmem_budget_bytes():
    """Generation-aware (budget_for_blocks, vmem_limit_bytes)."""
    try:
        cap = int(pltpu.get_tpu_info().vmem_capacity_bytes)
    except Exception:                       # pragma: no cover - conservative fallback
        cap = 64 * (1 << 20)                # assume v7x (smallest VMEM)
    # Block budget ~ 1/4 of physical VMEM: 16 MiB on v7x, 32 MiB on v5e/v6e.
    budget = max(8 * (1 << 20), min(cap // 4, 40 * (1 << 20)))
    # Scoped limit with headroom for temporaries / output buffers.
    limit = int(min(cap // 2, budget * 2 + (8 << 20)))
    return budget, limit


def _contrastive_kernel(v_ref, a_ref, vs_ref, as_ref, out_ref,
                        *, temp, weight, batch):
    i = pl.program_id(0)

    # Inputs are DMA'd in their native dtype; upcast to f32 here (in VMEM/vregs).
    v = v_ref[...].astype(jnp.float32)        # (Bblk, T, D)  video rows
    a = a_ref[...].astype(jnp.float32)        # (Bblk, T, D)  audio rows
    v_sel = vs_ref[...].astype(jnp.float32)   # (Bblk, D)     video[b, idx_b]
    a_sel = as_ref[...].astype(jnp.float32)   # (Bblk, D)     audio[b, idx_b]
    bblk = v.shape[0]

    # Inverse row norms: single EUP rsqrt each, clamped like F.cosine_similarity.
    inv_v = lax.rsqrt(jnp.maximum(jnp.sum(v * v, axis=-1), EPS * EPS))           # (Bblk, T)
    inv_a = lax.rsqrt(jnp.maximum(jnp.sum(a * a, axis=-1), EPS * EPS))           # (Bblk, T)
    inv_vs = lax.rsqrt(jnp.maximum(
        jnp.sum(v_sel * v_sel, axis=-1, keepdims=True), EPS * EPS))              # (Bblk, 1)
    inv_as = lax.rsqrt(jnp.maximum(
        jnp.sum(a_sel * a_sel, axis=-1, keepdims=True), EPS * EPS))              # (Bblk, 1)

    # Only the needed similarities (one row and one column of the TxT matrix each).
    col = jnp.sum(v * a_sel[:, None, :], axis=-1) * inv_v * inv_as   # cos(video_j, audio_idx)
    row = jnp.sum(a * v_sel[:, None, :], axis=-1) * inv_a * inv_vs   # cos(audio_j, video_idx)
    pos = (jnp.sum(v_sel * a_sel, axis=-1, keepdims=True)
           * inv_vs * inv_as)                                        # cos(video_idx, audio_idx)

    pos_e = jnp.exp(pos / temp)                                              # (Bblk, 1)
    den_a = jnp.sum(jnp.exp(col / temp), axis=-1, keepdims=True) - pos_e     # sum_{j != idx}
    den_v = jnp.sum(jnp.exp(row / temp), axis=-1, keepdims=True) - pos_e

    # -log(pos_e/den_a) - log(pos_e/den_v) = log(den_a*den_v) - 2*pos/temp
    loss = weight * (jnp.log(den_a * den_v) - 2.0 * pos / temp)              # (Bblk, 1)

    # Mask out batch lanes past B (covers the ragged / overrunning last block:
    # each element's denominator only uses its own row, so garbage stays confined).
    b_ids = i * bblk + lax.broadcasted_iota(jnp.int32, (bblk, 1), 0)
    loss = jnp.where(b_ids < batch, loss, 0.0)

    # Per-block partial sum, broadcast to this block's own lane-dense tile.
    out_ref[...] = jnp.broadcast_to(jnp.sum(loss), out_ref.shape)


def contrastive_loss(video, audio, mask, temp=TEMP, weight=WEIGHT):
    """Pallas implementation of ContrastiveLoss.forward (device arg dropped)."""
    assert video.shape == audio.shape and video.shape[0] == mask.shape[0]
    B, T, D = video.shape
    # NOTE: no wrapper-side astype — inputs travel HBM->VMEM in native dtype.

    # Precompute argmax index in the wrapper and gather the positive rows
    # (removes the mask DMA + in-kernel cross-lane argmax + any TxT work).
    idx = jnp.argmax(mask, axis=1)
    v_sel = jnp.take_along_axis(video, idx[:, None, None], axis=1)[:, 0, :]  # (B, D)
    a_sel = jnp.take_along_axis(audio, idx[:, None, None], axis=1)[:, 0, :]  # (B, D)

    # --- pick the batch-block size against a tile-padded VMEM estimate -------
    budget, vmem_limit = _vmem_budget_bytes()
    itemsize = jnp.dtype(video.dtype).itemsize
    packing = max(1, 4 // itemsize)            # sublane packing for sub-32-bit dtypes
    sub = 8 * packing                          # native tile height (8 f32, 16 bf16, ...)
    d_pad = _round_up(D, 128)
    nat_slab = _round_up(T, sub) * d_pad * itemsize        # one (T,D) slab, tile-padded
    nat_sel = sub * d_pad * itemsize                       # one (1,D) selected row, padded
    f32_slab = _round_up(T, 8) * d_pad * 4                 # f32 working copy of a slab
    # 2 inputs x 2 double-buffers (DMA) + ~4 f32-slab temporaries (upcasts + products).
    bytes_per_b = 2 * 2 * (nat_slab + nat_sel) + 4 * f32_slab

    max_bblk = max(8, (budget // bytes_per_b) // 8 * 8)
    bblk = int(min(max_bblk, _round_up(B, 8)))
    # Keep >=2 (ideally >=4) grid steps: lets v7x's two TensorCores split the
    # parallel axis and gives the double-buffered pipeline something to overlap.
    bblk = int(min(bblk, _round_up(pl.cdiv(B, 4), 8)))
    nblk = pl.cdiv(B, bblk)                    # ragged last block handled by in-kernel mask

    kernel = functools.partial(_contrastive_kernel,
                               temp=temp, weight=weight, batch=B)
    out = pl.pallas_call(
        kernel,
        out_shape=jax.ShapeDtypeStruct((nblk, 8, 128), jnp.float32),
        grid_spec=pltpu.PrefetchScalarGridSpec(
            num_scalar_prefetch=0,
            grid=(nblk,),
            in_specs=[
                pl.BlockSpec((bblk, T, D), lambda i: (i, 0, 0)),   # video block
                pl.BlockSpec((bblk, T, D), lambda i: (i, 0, 0)),   # audio block
                pl.BlockSpec((bblk, D), lambda i: (i, 0)),         # video[idx]
                pl.BlockSpec((bblk, D), lambda i: (i, 0)),         # audio[idx]
            ],
            out_specs=pl.BlockSpec((1, 8, 128), lambda i: (i, 0, 0)),
        ),
        compiler_params=pltpu.CompilerParams(
            dimension_semantics=("parallel",),     # no carried state -> megacore OK
            vmem_limit_bytes=vmem_limit),
    )(video, audio, v_sel, a_sel)

    # Every element of each (1,8,128) tile holds that block's partial sum:
    # dense reduce then divide, instead of a strided [:,0,0] gather.
    total = jnp.sum(out) * (1.0 / (8 * 128))
    return (total / B).reshape((1,))   # matches torch output shape (1,)


def _reference(video, audio, mask, temp=TEMP, weight=WEIGHT):
    """Pure-JAX reference replicating the PyTorch loops (vectorized)."""
    B = video.shape[0]

    def norm(x):
        return x / jnp.maximum(
            jnp.sqrt(jnp.sum(x * x, axis=-1, keepdims=True)), EPS)

    vn, an = norm(video.astype(jnp.float32)), norm(audio.astype(jnp.float32))
    S = jnp.einsum("btd,bsd->bts", vn, an)            # cos(v_t, a_s)
    E = jnp.exp(S / temp)
    idx = jnp.argmax(mask, axis=1)                    # (B,)
    b = jnp.arange(B)
    pos = E[b, idx, idx]
    denom_a = jnp.take_along_axis(E, idx[:, None, None], axis=2)[:, :, 0].sum(1) - pos
    denom_v = jnp.take_along_axis(E, idx[:, None, None], axis=1)[:, 0, :].sum(1) - pos
    loss_a = -jnp.log(pos / denom_a)
    loss_v = -jnp.log(pos / denom_v)
    return (jnp.sum(weight * loss_a + weight * loss_v, keepdims=True) / B)


if __name__ == "__main__":
    key = jax.random.PRNGKey(0)
    kv, ka, km = jax.random.split(key, 3)

    B, T, D = 2, 8, 32
    video = jax.random.normal(kv, (B, T, D), dtype=jnp.float32)
    audio = jax.random.normal(ka, (B, T, D), dtype=jnp.float32)
    mask = jax.random.uniform(km, (B, T), dtype=jnp.float32)

    out = jax.block_until_ready(contrastive_loss(video, audio, mask))
    ref = jax.block_until_ready(_reference(video, audio, mask))

    assert out.shape == (1,)
    assert jnp.allclose(out, ref, rtol=1e-4, atol=1e-5), (out, ref)
    print("KERNEL_OK")
</pallas_src>

<mosaic_0001>
module attributes {stable_mosaic.version = 11 : i64} {
  func.func @_contrastive_kernel(%arg0: i32, %arg1: memref<8x8x32xf32, #tpu.memory_space<vmem>>, %arg2: memref<8x8x32xf32, #tpu.memory_space<vmem>>, %arg3: memref<8x32xf32, #tpu.memory_space<vmem>>, %arg4: memref<8x32xf32, #tpu.memory_space<vmem>>, %arg5: memref<1x8x128xf32, #tpu.memory_space<vmem>>) attributes {dimension_semantics = [#tpu.dimension_semantics<parallel>], iteration_bounds = array<i64: 1>, scalar_prefetch = 0 : i64, scratch_operands = 0 : i64, tpu.core_type = #tpu.core_type<tc>, window_params = [{transform_indices = @transform_0, window_bounds = array<i64: 8, 8, 32>}, {transform_indices = @transform_1, window_bounds = array<i64: 8, 8, 32>}, {transform_indices = @transform_2, window_bounds = array<i64: 8, 32>}, {transform_indices = @transform_3, window_bounds = array<i64: 8, 32>}, {transform_indices = @transform_4, window_bounds = array<i64: 1, 8, 128>}]} {
    %c0 = arith.constant 0 : index
    %c0_0 = arith.constant 0 : index
    %c0_1 = arith.constant 0 : index
    %0 = vector.load %arg1[%c0, %c0_0, %c0_1] : memref<8x8x32xf32, #tpu.memory_space<vmem>>, vector<8x8x32xf32>
    %c0_2 = arith.constant 0 : index
    %c0_3 = arith.constant 0 : index
    %c0_4 = arith.constant 0 : index
    %1 = vector.load %arg2[%c0_2, %c0_3, %c0_4] : memref<8x8x32xf32, #tpu.memory_space<vmem>>, vector<8x8x32xf32>
    %c0_5 = arith.constant 0 : index
    %c0_6 = arith.constant 0 : index
    %2 = vector.load %arg3[%c0_5, %c0_6] : memref<8x32xf32, #tpu.memory_space<vmem>>, vector<8x32xf32>
    %c0_7 = arith.constant 0 : index
    %c0_8 = arith.constant 0 : index
    %3 = vector.load %arg4[%c0_7, %c0_8] : memref<8x32xf32, #tpu.memory_space<vmem>>, vector<8x32xf32>
    %4 = arith.mulf %0, %0 : vector<8x8x32xf32>
    %cst = arith.constant dense<0.000000e+00> : vector<8x8xf32>
    %5 = vector.multi_reduction <add>, %4, %cst [2] : vector<8x8x32xf32> to vector<8x8xf32>
    %cst_9 = arith.constant 1.000000e-16 : f32
    %6 = vector.broadcast %cst_9 : f32 to vector<8x8xf32>
    %7 = arith.maximumf %5, %6 : vector<8x8xf32>
    %8 = math.rsqrt %7 : vector<8x8xf32>
    %9 = arith.mulf %1, %1 : vector<8x8x32xf32>
    %cst_10 = arith.constant dense<0.000000e+00> : vector<8x8xf32>
    %10 = vector.multi_reduction <add>, %9, %cst_10 [2] : vector<8x8x32xf32> to vector<8x8xf32>
    %cst_11 = arith.constant 1.000000e-16 : f32
    %11 = vector.broadcast %cst_11 : f32 to vector<8x8xf32>
    %12 = arith.maximumf %10, %11 : vector<8x8xf32>
    %13 = math.rsqrt %12 : vector<8x8xf32>
    %14 = arith.mulf %2, %2 : vector<8x32xf32>
    %cst_12 = arith.constant dense<0.000000e+00> : vector<8xf32>
    %15 = vector.multi_reduction <add>, %14, %cst_12 [1] : vector<8x32xf32> to vector<8xf32>
    %16 = vector.shape_cast %15 : vector<8xf32> to vector<8x1xf32>
    %cst_13 = arith.constant 1.000000e-16 : f32
    %17 = vector.broadcast %cst_13 : f32 to vector<8x1xf32>
    %18 = arith.maximumf %16, %17 : vector<8x1xf32>
    %19 = math.rsqrt %18 : vector<8x1xf32>
    %20 = arith.mulf %3, %3 : vector<8x32xf32>
    %cst_14 = arith.constant dense<0.000000e+00> : vector<8xf32>
    %21 = vector.multi_reduction <add>, %20, %cst_14 [1] : vector<8x32xf32> to vector<8xf32>
    %22 = vector.shape_cast %21 : vector<8xf32> to vector<8x1xf32>
    %cst_15 = arith.constant 1.000000e-16 : f32
    %23 = vector.broadcast %cst_15 : f32 to vector<8x1xf32>
    %24 = arith.maximumf %22, %23 : vector<8x1xf32>
    %25 = math.rsqrt %24 : vector<8x1xf32>
    %26 = vector.shape_cast %3 : vector<8x32xf32> to vector<8x1x32xf32>
    %27 = vector.broadcast %26 : vector<8x1x32xf32> to vector<8x8x32xf32>
    %28 = arith.mulf %0, %27 : vector<8x8x32xf32>
    %cst_16 = arith.constant dense<0.000000e+00> : vector<8x8xf32>
    %29 = vector.multi_reduction <add>, %28, %cst_16 [2] : vector<8x8x32xf32> to vector<8x8xf32>
    %30 = arith.mulf %29, %8 : vector<8x8xf32>
    %31 = vector.broadcast %25 : vector<8x1xf32> to vector<8x8xf32>
    %32 = arith.mulf %30, %31 : vector<8x8xf32>
    %33 = vector.shape_cast %2 : vector<8x32xf32> to vector<8x1x32xf32>
    %34 = vector.broadcast %33 : vector<8x1x32xf32> to vector<8x8x32xf32>
    %35 = arith.mulf %1, %34 : vector<8x8x32xf32>
    %cst_17 = arith.constant dense<0.000000e+00> : vector<8x8xf32>
    %36 = vector.multi_reduction <add>, %35, %cst_17 [2] : vector<8x8x32xf32> to vector<8x8xf32>
    %37 = arith.mulf %36, %13 : vector<8x8xf32>
    %38 = vector.broadcast %19 : vector<8x1xf32> to vector<8x8xf32>
    %39 = arith.mulf %37, %38 : vector<8x8xf32>
    %40 = arith.mulf %2, %3 : vector<8x32xf32>
    %cst_18 = arith.constant dense<0.000000e+00> : vector<8xf32>
    %41 = vector.multi_reduction <add>, %40, %cst_18 [1] : vector<8x32xf32> to vector<8xf32>
    %42 = vector.shape_cast %41 : vector<8xf32> to vector<8x1xf32>
    %43 = arith.mulf %42, %19 : vector<8x1xf32>
    %44 = arith.mulf %43, %25 : vector<8x1xf32>
    %cst_19 = arith.constant 7.000000e-02 : f32
    %45 = vector.broadcast %cst_19 : f32 to vector<8x1xf32>
    %46 = arith.divf %44, %45 : vector<8x1xf32>
    %47 = math.exp %46 : vector<8x1xf32>
    %cst_20 = arith.constant 7.000000e-02 : f32
    %48 = vector.broadcast %cst_20 : f32 to vector<8x8xf32>
    %49 = arith.divf %32, %48 : vector<8x8xf32>
    %50 = math.exp %49 : vector<8x8xf32>
    %cst_21 = arith.constant dense<0.000000e+00> : vector<8xf32>
    %51 = vector.multi_reduction <add>, %50, %cst_21 [1] : vector<8x8xf32> to vector<8xf32>
    %52 = vector.shape_cast %51 : vector<8xf32> to vector<8x1xf32>
    %53 = arith.subf %52, %47 : vector<8x1xf32>
    %cst_22 = arith.constant 7.000000e-02 : f32
    %54 = vector.broadcast %cst_22 : f32 to vector<8x8xf32>
    %55 = arith.divf %39, %54 : vector<8x8xf32>
    %56 = math.exp %55 : vector<8x8xf32>
    %cst_23 = arith.constant dense<0.000000e+00> : vector<8xf32>
    %57 = vector.multi_reduction <add>, %56, %cst_23 [1] : vector<8x8xf32> to vector<8xf32>
    %58 = vector.shape_cast %57 : vector<8xf32> to vector<8x1xf32>
    %59 = arith.subf %58, %47 : vector<8x1xf32>
    %60 = arith.mulf %53, %59 : vector<8x1xf32>
    %61 = math.log %60 : vector<8x1xf32>
    %cst_24 = arith.constant 2.000000e+00 : f32
    %62 = vector.broadcast %cst_24 : f32 to vector<8x1xf32>
    %63 = arith.mulf %62, %44 : vector<8x1xf32>
    %cst_25 = arith.constant 7.000000e-02 : f32
    %64 = vector.broadcast %cst_25 : f32 to vector<8x1xf32>
    %65 = arith.divf %63, %64 : vector<8x1xf32>
    %66 = arith.subf %61, %65 : vector<8x1xf32>
    %cst_26 = arith.constant 5.000000e-01 : f32
    %67 = vector.broadcast %cst_26 : f32 to vector<8x1xf32>
    %68 = arith.mulf %67, %66 : vector<8x1xf32>
    %c8_i32 = arith.constant 8 : i32
    %69 = arith.muli %arg0, %c8_i32 : i32
    %70 = tpu.iota {dimensions = array<i32: 0>} : vector<8x1xi32>
    %71 = vector.broadcast %69 : i32 to vector<8x1xi32>
    %72 = arith.addi %71, %70 : vector<8x1xi32>
    %c2_i32 = arith.constant 2 : i32
    %73 = vector.broadcast %c2_i32 : i32 to vector<8x1xi32>
    %74 = arith.cmpi slt, %72, %73 : vector<8x1xi32>
    %cst_27 = arith.constant 0.000000e+00 : f32
    %75 = vector.broadcast %cst_27 : f32 to vector<8x1xf32>
    %76 = arith.select %74, %68, %75 : vector<8x1xi1>, vector<8x1xf32>
    %77 = vector.shape_cast %76 : vector<8x1xf32> to vector<1x8x1xf32>
    %cst_28 = arith.constant dense<0.000000e+00> : vector<1xf32>
    %78 = vector.multi_reduction <add>, %77, %cst_28 [1, 2] : vector<1x8x1xf32> to vector<1xf32>
    %79 = vector.shape_cast %78 : vector<1xf32> to vector<1x1x1xf32>
    %80 = vector.extract %79[0, 0, 0] : f32 from vector<1x1x1xf32>
    %81 = vector.broadcast %80 : f32 to vector<1x8x128xf32>
    %c0_29 = arith.constant 0 : index
    %c0_30 = arith.constant 0 : index
    %c0_31 = arith.constant 0 : index
    %82 = vector.load %arg5[%c0_29, %c0_30, %c0_31] : memref<1x8x128xf32, #tpu.memory_space<vmem>>, vector<1x8x128xf32>
    tpu.vector_store %arg5[%c0_29, %c0_30, %c0_31], %81 {strides = array<i32>} : memref<1x8x128xf32, #tpu.memory_space<vmem>>, vector<1x8x128xf32>,
    return
  }
  func.func @transform_0(%arg0: i32) -> (i32, i32, i32) {
    %c0_i32 = arith.constant 0 : i32
    %c0_i32_0 = arith.constant 0 : i32
    %c0_i32_1 = arith.constant 0 : i32
    return %arg0, %c0_i32, %c0_i32_0 : i32, i32, i32
  }
  func.func @transform_1(%arg0: i32) -> (i32, i32, i32) {
    %c0_i32 = arith.constant 0 : i32
    %c0_i32_0 = arith.constant 0 : i32
    %c0_i32_1 = arith.constant 0 : i32
    return %arg0, %c0_i32, %c0_i32_0 : i32, i32, i32
  }
  func.func @transform_2(%arg0: i32) -> (i32, i32) {
    %c0_i32 = arith.constant 0 : i32
    %c0_i32_0 = arith.constant 0 : i32
    return %arg0, %c0_i32 : i32, i32
  }
  func.func @transform_3(%arg0: i32) -> (i32, i32) {
    %c0_i32 = arith.constant 0 : i32
    %c0_i32_0 = arith.constant 0 : i32
    return %arg0, %c0_i32 : i32, i32
  }
  func.func @transform_4(%arg0: i32) -> (i32, i32, i32) {
    %c0_i32 = arith.constant 0 : i32
    %c0_i32_0 = arith.constant 0 : i32
    %c0_i32_1 = arith.constant 0 : i32
    return %arg0, %c0_i32, %c0_i32_0 : i32, i32, i32
  }
}

</mosaic_0001>

<llo_original>
// kernel: tpu_custom_call.1
$region0: #{tpu_custom_call.1}
  #allocation0 [shape = 'u32[]', space=smem, size = 0x4, offset = 0x4, fixed_abs, tag = 'smem constant byte address 0x4 - core index']
  #allocation1 [shape = 'u32[144,128]{1,0:T(1,128)}', space=vmem, size = 0x12000, scoped, tag = 'internal scratch']
  %s0 = inlined_call_operand.hbm [shape: f32[2,8,32], index: 0, kind: input, shape index: {}]
  %s1 = inlined_call_operand.hbm [shape: f32[2,8,32], index: 1, kind: input, shape index: {}]
  %s2 = inlined_call_operand.vmem [shape: f32[2,32], index: 2, kind: input, shape index: {}]
  %s3 = inlined_call_operand.vmem [shape: f32[2,32], index: 3, kind: input, shape index: {}]
  %s4 = inlined_call_operand.hbm [shape: f32[1,8,128], index: 4, kind: output, shape index: {}]
  %s5 = sld [smem:[#allocation0]]
  $region34: #{tpu_custom_call.1} parent=0
    _
  %s7 = ssub.s32 1, %s5
  %s8 = scalar_select 0, %s7, %s5
  $region1: #{tpu_custom_call.1} parent=0
    #allocation2 [shape = 'u8[32768]{0}', space=vmem, size = 0x8000, scoped, tag = 'input window, operand 0, single buffered']
    #allocation3 [shape = 's32[1]{0}', space=sflag, size = 0x4, scoped, tag = 'scoped memory for tpu_custom_call.1']
    #allocation4 [shape = 's32[1]{0}', space=sflag, size = 0x4, scoped, tag = 'scoped memory for tpu_custom_call.1']
    #allocation5 [shape = 'u8[32768]{0}', space=vmem, size = 0x8000, scoped, tag = 'input window, operand 1, single buffered']
    #allocation6 [shape = 's32[1]{0}', space=sflag, size = 0x4, scoped, tag = 'scoped memory for tpu_custom_call.1']
    #allocation7 [shape = 'u8[4096]{0}', space=vmem, size = 0x1000, scoped, tag = 'output window, operand 0, single buffered']
    %9 = vsyncpa [#allocation3], 0
    %10 = vsyncpa [#allocation6], 0
    %11 = vsyncpa [#allocation4], 0
    // Predicated region
    $region2: #{tpu_custom_call.1} parent=1 // pred_check
      _
    $region3: #{tpu_custom_call.1} parent=1 // pred_check_branch
      %13 = sbr.rel (0) target = $region5
    $region4: #{tpu_custom_call.1} parent=1 // pred_region
      %s15 = ssub.s32 1024, 256
      %16 = vsyncadd [#allocation3], %s15
      %s17 = sshll.u32 [#allocation2], 4
      %s18 = int_to_ptr.vmem [resolvable:$true] %s17
      %23 = dma.hbm_to_vmem [thread:$0]  %s0, 256, %s18, [#allocation3], 128, 128, 8
    $region5: #{tpu_custom_call.1} parent=1 // pred_fallthru
      _
    // Predicated region
    $region6: #{tpu_custom_call.1} parent=1 // pred_check
      _
    $region7: #{tpu_custom_call.1} parent=1 // pred_check_branch
      %25 = sbr.rel (0) target = $region9
    $region8: #{tpu_custom_call.1} parent=1 // pred_region
      %s27 = ssub.s32 1024, 256
      %28 = vsyncadd [#allocation6], %s27
      %s29 = sshll.u32 [#allocation5], 4
      %s30 = int_to_ptr.vmem [resolvable:$true] %s29
      %35 = dma.hbm_to_vmem [thread:$0]  %s1, 256, %s30, [#allocation6], 128, 128, 8
    $region9: #{tpu_custom_call.1} parent=1 // pred_fallthru
      _
    // Predicated region
    $region10: #{tpu_custom_call.1} parent=1 // pred_check
      _
    $region11: #{tpu_custom_call.1} parent=1 // pred_check_branch
      %37 = sbr.rel (0) target = $region13
    $region12: #{tpu_custom_call.1} parent=1 // pred_region
      _
    $region13: #{tpu_custom_call.1} parent=1 // pred_fallthru
      _
    // Predicated region
    $region14: #{tpu_custom_call.1} parent=1 // pred_check
      _
    $region15: #{tpu_custom_call.1} parent=1 // pred_check_branch
      %39 = sbr.rel (0) target = $region17
    $region16: #{tpu_custom_call.1} parent=1 // pred_region
      _
    $region17: #{tpu_custom_call.1} parent=1 // pred_fallthru
      _
    // Predicated region
    $region18: #{tpu_custom_call.1} parent=1 // pred_check
      _
    $region19: #{tpu_custom_call.1} parent=1 // pred_check_branch
      %41 = sbr.rel (0) target = $region21
    $region20: #{tpu_custom_call.1} parent=1 // pred_region
      %42 = dma.done [#allocation3], 1024
    $region21: #{tpu_custom_call.1} parent=1 // pred_fallthru
      _
    // Predicated region
    $region22: #{tpu_custom_call.1} parent=1 // pred_check
      _
    $region23: #{tpu_custom_call.1} parent=1 // pred_check_branch
      %44 = sbr.rel (0) target = $region25
    $region24: #{tpu_custom_call.1} parent=1 // pred_region
      %45 = dma.done [#allocation6], 1024
    $region25: #{tpu_custom_call.1} parent=1 // pred_fallthru
      _
    %v46 = vld [vmem:[#allocation2] sm:$0xff]
    %v47 = vld [vmem:[#allocation2 + $0x8] sm:$0xff]
    %v48 = vld [vmem:[#allocation2 + $0x10] sm:$0xff]
    %v49 = vld [vmem:[#allocation2 + $0x18] sm:$0xff]
    %v50 = vld [vmem:[#allocation2 + $0x20] sm:$0xff]
    %v51 = vld [vmem:[#allocation2 + $0x28] sm:$0xff]
    %v52 = vld [vmem:[#allocation2 + $0x30] sm:$0xff]
    %v53 = vld [vmem:[#allocation2 + $0x38] sm:$0xff]
    %v54 = vld [vmem:[#allocation5] sm:$0xff]
    %v55 = vld [vmem:[#allocation5 + $0x8] sm:$0xff]
    %v56 = vld [vmem:[#allocation5 + $0x10] sm:$0xff]
    %v57 = vld [vmem:[#allocation5 + $0x18] sm:$0xff]
    %v58 = vld [vmem:[#allocation5 + $0x20] sm:$0xff]
    %v59 = vld [vmem:[#allocation5 + $0x28] sm:$0xff]
    %v60 = vld [vmem:[#allocation5 + $0x30] sm:$0xff]
    %v61 = vld [vmem:[#allocation5 + $0x38] sm:$0xff]
    %v62 = vld [vmem:[%s2] sm:$0xff]
    %v63 = vld [vmem:[%s3] sm:$0xff]
    %v64 = vmul.f32 %v46, %v46
    %v65 = vmul.f32 %v47, %v47
    %v66 = vmul.f32 %v48, %v48
    %v67 = vmul.f32 %v49, %v49
    %v68 = vmul.f32 %v50, %v50
    %v69 = vmul.f32 %v51, %v51
    %v70 = vmul.f32 %v52, %v52
    %v71 = vmul.f32 %v53, %v53
    %vm72 = vcmask 261120
    %v73 = vsel %vm72, %v64, 0.0
    %74 = vadd.xlane.f32.xlu0 %v73
    %v75 = vpop.xlane.xlu0 %74
    %v76 = vsel %vm72, %v65, 0.0
    %77 = vadd.xlane.f32.xlu0 %v76
    %v78 = vpop.xlane.xlu0 %77
    %v79 = vsel %vm72, %v66, 0.0
    %80 = vadd.xlane.f32.xlu0 %v79
    %v81 = vpop.xlane.xlu0 %80
    %v82 = vsel %vm72, %v67, 0.0
    %83 = vadd.xlane.f32.xlu0 %v82
    %v84 = vpop.xlane.xlu0 %83
    %v85 = vsel %vm72, %v68, 0.0
    %86 = vadd.xlane.f32.xlu0 %v85
    %v87 = vpop.xlane.xlu0 %86
    %v88 = vsel %vm72, %v69, 0.0
    %89 = vadd.xlane.f32.xlu0 %v88
    %v90 = vpop.xlane.xlu0 %89
    %v91 = vsel %vm72, %v70, 0.0
    %92 = vadd.xlane.f32.xlu0 %v91
    %v93 = vpop.xlane.xlu0 %92
    %v94 = vsel %vm72, %v71, 0.0
    %95 = vadd.xlane.f32.xlu0 %v94
    %v96 = vpop.xlane.xlu0 %95
    %v97 = vmax.f32 %v75, 1e-16
    %v98 = vmax.f32 %v78, 1e-16
    %v99 = vmax.f32 %v81, 1e-16
    %v100 = vmax.f32 %v84, 1e-16
    %v101 = vmax.f32 %v87, 1e-16
    %v102 = vmax.f32 %v90, 1e-16
    %v103 = vmax.f32 %v93, 1e-16
    %v104 = vmax.f32 %v96, 1e-16
    %v105 = vrsqrt.pop %v97
    %v106 = vrsqrt.pop %v98
    %v107 = vrsqrt.pop %v99
    %v108 = vrsqrt.pop %v100
    %v109 = vrsqrt.pop %v101
    %v110 = vrsqrt.pop %v102
    %v111 = vrsqrt.pop %v103
    %v112 = vrsqrt.pop %v104
    %v113 = vmul.f32 %v54, %v54
    %v114 = vmul.f32 %v55, %v55
    %v115 = vmul.f32 %v56, %v56
    %v116 = vmul.f32 %v57, %v57
    %v117 = vmul.f32 %v58, %v58
    %v118 = vmul.f32 %v59, %v59
    %v119 = vmul.f32 %v60, %v60
    %v120 = vmul.f32 %v61, %v61
    %v121 = vsel %vm72, %v113, 0.0
    %122 = vadd.xlane.f32.xlu0 %v121
    %v123 = vpop.xlane.xlu0 %122
    %v124 = vsel %vm72, %v114, 0.0
    %125 = vadd.xlane.f32.xlu0 %v124
    %v126 = vpop.xlane.xlu0 %125
    %v127 = vsel %vm72, %v115, 0.0
    %128 = vadd.xlane.f32.xlu0 %v127
    %v129 = vpop.xlane.xlu0 %128
    %v130 = vsel %vm72, %v116, 0.0
    %131 = vadd.xlane.f32.xlu0 %v130
    %v132 = vpop.xlane.xlu0 %131
    %v133 = vsel %vm72, %v117, 0.0
    %134 = vadd.xlane.f32.xlu0 %v133
    %v135 = vpop.xlane.xlu0 %134
    %v136 = vsel %vm72, %v118, 0.0
    %137 = vadd.xlane.f32.xlu0 %v136
    %v138 = vpop.xlane.xlu0 %137
    %v139 = vsel %vm72, %v119, 0.0
    %140 = vadd.xlane.f32.xlu0 %v139
    %v141 = vpop.xlane.xlu0 %140
    %v142 = vsel %vm72, %v120, 0.0
    %143 = vadd.xlane.f32.xlu0 %v142
    %v144 = vpop.xlane.xlu0 %143
    %v145 = vmax.f32 %v123, 1e-16
    %v146 = vmax.f32 %v126, 1e-16
    %v147 = vmax.f32 %v129, 1e-16
    %v148 = vmax.f32 %v132, 1e-16
    %v149 = vmax.f32 %v135, 1e-16
    %v150 = vmax.f32 %v138, 1e-16
    %v151 = vmax.f32 %v141, 1e-16
    %v152 = vmax.f32 %v144, 1e-16
    %v153 = vrsqrt.pop %v145
    %v154 = vrsqrt.pop %v146
    %v155 = vrsqrt.pop %v147
    %v156 = vrsqrt.pop %v148
    %v157 = vrsqrt.pop %v149
    %v158 = vrsqrt.pop %v150
    %v159 = vrsqrt.pop %v151
    %v160 = vrsqrt.pop %v152
    %v161 = vmul.f32 %v62, %v62
    %v162 = vsel %vm72, %v161, 0.0
    %163 = vadd.xlane.f32.xlu0 %v162
    %v164 = vpop.xlane.xlu0 %163
    %v165 = vmax.f32 %v164, 1e-16
    %v166 = vrsqrt.pop %v165
    %v167 = vmul.f32 %v63, %v63
    %v168 = vsel %vm72, %v167, 0.0
    %169 = vadd.xlane.f32.xlu0 %v168
    %v170 = vpop.xlane.xlu0 %169
    %v171 = vmax.f32 %v170, 1e-16
    %v172 = vrsqrt.pop %v171
    %v174 = vcombine.high %v63, %v63
    %v176 = vunpack.c.l.s4 1966171168
    %v177 = vunpack.c.0.s8 %v176
    %v178 = vlaneseq
    %v179 = vshrl.u32 %v178, 7
    %v180 = vsub.s32 %v177, %v179
    %v181 = vrot.slane %v63, %v180
    %v183 = vunpack.c.l.s4 1966171168
    %v184 = vunpack.c.0.s8 %v183
    %v185 = vlaneseq
    %v186 = vshrl.u32 %v185, 7
    %v187 = vsub.s32 %v184, %v186
    %v188 = vrot.slane %v174, %v187
    %v189 = vcombine.high %v181, %v181
    %v190 = vcombine.high %v188, %v188
    %v192 = vunpack.c.l.s4 1966171168
    %v193 = vunpack.c.0.s8 %v192
    %v194 = vlaneseq
    %v195 = vshrl.u32 %v194, 7
    %v196 = vsub.s32 %v193, %v195
    %v197 = vrot.slane %v181, %v196
    %v199 = vunpack.c.l.s4 1966171168
    %v200 = vunpack.c.0.s8 %v199
    %v201 = vlaneseq
    %v202 = vshrl.u32 %v201, 7
    %v203 = vsub.s32 %v200, %v202
    %v204 = vrot.slane %v188, %v203
    %v206 = vunpack.c.l.s4 1966171168
    %v207 = vunpack.c.0.s8 %v206
    %v208 = vlaneseq
    %v209 = vshrl.u32 %v208, 7
    %v210 = vsub.s32 %v207, %v209
    %v211 = vrot.slane %v189, %v210
    %v213 = vunpack.c.l.s4 1966171168
    %v214 = vunpack.c.0.s8 %v213
    %v215 = vlaneseq
    %v216 = vshrl.u32 %v215, 7
    %v217 = vsub.s32 %v214, %v216
    %v218 = vrot.slane %v190, %v217
    %v219 = vcombine.high %v197, %v197
    %v220 = vcombine.high %v204, %v204
    %v221 = vcombine.high %v211, %v211
    %v222 = vcombine.high %v218, %v218
    %v223 = vlaneseq
    %v224 = vshrl.u32 %v223, 7
    %v225 = vsub.s32 0, %v224
    %v226 = vrot.slane %v197, %v225
    %v227 = vlaneseq
    %v228 = vshrl.u32 %v227, 7
    %v229 = vsub.s32 0, %v228
    %v230 = vrot.slane %v211, %v229
    %v231 = vlaneseq
    %v232 = vshrl.u32 %v231, 7
    %v233 = vsub.s32 0, %v232
    %v234 = vrot.slane %v219, %v233
    %v235 = vlaneseq
    %v236 = vshrl.u32 %v235, 7
    %v237 = vsub.s32 0, %v236
    %v238 = vrot.slane %v221, %v237
    %v239 = vlaneseq
    %v240 = vshrl.u32 %v239, 7
    %v241 = vsub.s32 0, %v240
    %v242 = vrot.slane %v204, %v241
    %v243 = vlaneseq
    %v244 = vshrl.u32 %v243, 7
    %v245 = vsub.s32 0, %v244
    %v246 = vrot.slane %v218, %v245
    %v247 = vlaneseq
    %v248 = vshrl.u32 %v247, 7
    %v249 = vsub.s32 0, %v248
    %v250 = vrot.slane %v220, %v249
    %v251 = vlaneseq
    %v252 = vshrl.u32 %v251, 7
    %v253 = vsub.s32 0, %v252
    %v254 = vrot.slane %v222, %v253
    %v263 = vmul.f32 %v46, %v226
    %v264 = vmul.f32 %v47, %v230
    %v265 = vmul.f32 %v48, %v234
    %v266 = vmul.f32 %v49, %v238
    %v267 = vmul.f32 %v50, %v242
    %v268 = vmul.f32 %v51, %v246
    %v269 = vmul.f32 %v52, %v250
    %v270 = vmul.f32 %v53, %v254
    %v271 = vsel %vm72, %v263, 0.0
    %272 = vadd.xlane.f32.xlu0 %v271
    %v273 = vpop.xlane.xlu0 %272
    %v274 = vsel %vm72, %v264, 0.0
    %275 = vadd.xlane.f32.xlu0 %v274
    %v276 = vpop.xlane.xlu0 %275
    %v277 = vsel %vm72, %v265, 0.0
    %278 = vadd.xlane.f32.xlu0 %v277
    %v279 = vpop.xlane.xlu0 %278
    %v280 = vsel %vm72, %v266, 0.0
    %281 = vadd.xlane.f32.xlu0 %v280
    %v282 = vpop.xlane.xlu0 %281
    %v283 = vsel %vm72, %v267, 0.0
    %284 = vadd.xlane.f32.xlu0 %v283
    %v285 = vpop.xlane.xlu0 %284
    %v286 = vsel %vm72, %v268, 0.0
    %287 = vadd.xlane.f32.xlu0 %v286
    %v288 = vpop.xlane.xlu0 %287
    %v289 = vsel %vm72, %v269, 0.0
    %290 = vadd.xlane.f32.xlu0 %v289
    %v291 = vpop.xlane.xlu0 %290
    %v292 = vsel %vm72, %v270, 0.0
    %293 = vadd.xlane.f32.xlu0 %v292
    %v294 = vpop.xlane.xlu0 %293
    %v295 = vmul.f32 %v273, %v105
    %v296 = vmul.f32 %v276, %v106
    %v297 = vmul.f32 %v279, %v107
    %v298 = vmul.f32 %v282, %v108
    %v299 = vmul.f32 %v285, %v109
    %v300 = vmul.f32 %v288, %v110
    %v301 = vmul.f32 %v291, %v111
    %v302 = vmul.f32 %v294, %v112
    %v304 = vlaneseq
    %v305 = vshrl.u32 %v304, 7
    %v306 = vsub.s32 0, %v305
    %v307 = vrot.slane %v172, %v306
    %v308 = vlaneseq
    %v309 = vshrl.u32 %v308, 7
    %v310 = vsub.s32 1, %v309
    %v311 = vrot.slane %v172, %v310
    %v312 = vlaneseq
    %v313 = vshrl.u32 %v312, 7
    %v314 = vsub.s32 2, %v313
    %v315 = vrot.slane %v172, %v314
    %v316 = vlaneseq
    %v317 = vshrl.u32 %v316, 7
    %v318 = vsub.s32 3, %v317
    %v319 = vrot.slane %v172, %v318
    %v320 = vlaneseq
    %v321 = vshrl.u32 %v320, 7
    %v322 = vsub.s32 4, %v321
    %v323 = vrot.slane %v172, %v322
    %v324 = vlaneseq
    %v325 = vshrl.u32 %v324, 7
    %v326 = vsub.s32 5, %v325
    %v327 = vrot.slane %v172, %v326
    %v328 = vlaneseq
    %v329 = vshrl.u32 %v328, 7
    %v330 = vsub.s32 6, %v329
    %v331 = vrot.slane %v172, %v330
    %v332 = vlaneseq
    %v333 = vshrl.u32 %v332, 7
    %v334 = vsub.s32 7, %v333
    %v335 = vrot.slane %v172, %v334
    %v344 = vmul.f32 %v295, %v307
    %v345 = vmul.f32 %v296, %v311
    %v346 = vmul.f32 %v297, %v315
    %v347 = vmul.f32 %v298, %v319
    %v348 = vmul.f32 %v299, %v323
    %v349 = vmul.f32 %v300, %v327
    %v350 = vmul.f32 %v301, %v331
    %v351 = vmul.f32 %v302, %v335
    %v353 = vcombine.high %v62, %v62
    %v355 = vunpack.c.l.s4 1966171168
    %v356 = vunpack.c.0.s8 %v355
    %v357 = vlaneseq
    %v358 = vshrl.u32 %v357, 7
    %v359 = vsub.s32 %v356, %v358
    %v360 = vrot.slane %v62, %v359
    %v362 = vunpack.c.l.s4 1966171168
    %v363 = vunpack.c.0.s8 %v362
    %v364 = vlaneseq
    %v365 = vshrl.u32 %v364, 7
    %v366 = vsub.s32 %v363, %v365
    %v367 = vrot.slane %v353, %v366
    %v368 = vcombine.high %v360, %v360
    %v369 = vcombine.high %v367, %v367
    %v371 = vunpack.c.l.s4 1966171168
    %v372 = vunpack.c.0.s8 %v371
    %v373 = vlaneseq
    %v374 = vshrl.u32 %v373, 7
    %v375 = vsub.s32 %v372, %v374
    %v376 = vrot.slane %v360, %v375
    %v378 = vunpack.c.l.s4 1966171168
    %v379 = vunpack.c.0.s8 %v378
    %v380 = vlaneseq
    %v381 = vshrl.u32 %v380, 7
    %v382 = vsub.s32 %v379, %v381
    %v383 = vrot.slane %v367, %v382
    %v385 = vunpack.c.l.s4 1966171168
    %v386 = vunpack.c.0.s8 %v385
    %v387 = vlaneseq
    %v388 = vshrl.u32 %v387, 7
    %v389 = vsub.s32 %v386, %v388
    %v390 = vrot.slane %v368, %v389
    %v392 = vunpack.c.l.s4 1966171168
    %v393 = vunpack.c.0.s8 %v392
    %v394 = vlaneseq
    %v395 = vshrl.u32 %v394, 7
    %v396 = vsub.s32 %v393, %v395
    %v397 = vrot.slane %v369, %v396
    %v398 = vcombine.high %v376, %v376
    %v399 = vcombine.high %v383, %v383
    %v400 = vcombine.high %v390, %v390
    %v401 = vcombine.high %v397, %v397
    %v402 = vlaneseq
    %v403 = vshrl.u32 %v402, 7
    %v404 = vsub.s32 0, %v403
    %v405 = vrot.slane %v376, %v404
    %v406 = vlaneseq
    %v407 = vshrl.u32 %v406, 7
    %v408 = vsub.s32 0, %v407
    %v409 = vrot.slane %v390, %v408
    %v410 = vlaneseq
    %v411 = vshrl.u32 %v410, 7
    %v412 = vsub.s32 0, %v411
    %v413 = vrot.slane %v398, %v412
    %v414 = vlaneseq
    %v415 = vshrl.u32 %v414, 7
    %v416 = vsub.s32 0, %v415
    %v417 = vrot.slane %v400, %v416
    %v418 = vlaneseq
    %v419 = vshrl.u32 %v418, 7
    %v420 = vsub.s32 0, %v419
    %v421 = vrot.slane %v383, %v420
    %v422 = vlaneseq
    %v423 = vshrl.u32 %v422, 7
    %v424 = vsub.s32 0, %v423
    %v425 = vrot.slane %v397, %v424
    %v426 = vlaneseq
    %v427 = vshrl.u32 %v426, 7
    %v428 = vsub.s32 0, %v427
    %v429 = vrot.slane %v399, %v428
    %v430 = vlaneseq
    %v431 = vshrl.u32 %v430, 7
    %v432 = vsub.s32 0, %v431
    %v433 = vrot.slane %v401, %v432
    %v442 = vmul.f32 %v54, %v405
    %v443 = vmul.f32 %v55, %v409
    %v444 = vmul.f32 %v56, %v413
    %v445 = vmul.f32 %v57, %v417
    %v446 = vmul.f32 %v58, %v421
    %v447 = vmul.f32 %v59, %v425
    %v448 = vmul.f32 %v60, %v429
    %v449 = vmul.f32 %v61, %v433
    %v450 = vsel %vm72, %v442, 0.0
    %451 = vadd.xlane.f32.xlu0 %v450
    %v452 = vpop.xlane.xlu0 %451
    %v453 = vsel %vm72, %v443, 0.0
    %454 = vadd.xlane.f32.xlu0 %v453
    %v455 = vpop.xlane.xlu0 %454
    %v456 = vsel %vm72, %v444, 0.0
    %457 = vadd.xlane.f32.xlu0 %v456
    %v458 = vpop.xlane.xlu0 %457
    %v459 = vsel %vm72, %v445, 0.0
    %460 = vadd.xlane.f32.xlu0 %v459
    %v461 = vpop.xlane.xlu0 %460
    %v462 = vsel %vm72, %v446, 0.0
    %463 = vadd.xlane.f32.xlu0 %v462
    %v464 = vpop.xlane.xlu0 %463
    %v465 = vsel %vm72, %v447, 0.0
    %466 = vadd.xlane.f32.xlu0 %v465
    %v467 = vpop.xlane.xlu0 %466
    %v468 = vsel %vm72, %v448, 0.0
    %469 = vadd.xlane.f32.xlu0 %v468
    %v470 = vpop.xlane.xlu0 %469
    %v471 = vsel %vm72, %v449, 0.0
    %472 = vadd.xlane.f32.xlu0 %v471
    %v473 = vpop.xlane.xlu0 %472
    %v474 = vmul.f32 %v452, %v153
    %v475 = vmul.f32 %v455, %v154
    %v476 = vmul.f32 %v458, %v155
    %v477 = vmul.f32 %v461, %v156
    %v478 = vmul.f32 %v464, %v157
    %v479 = vmul.f32 %v467, %v158
    %v480 = vmul.f32 %v470, %v159
    %v481 = vmul.f32 %v473, %v160
    %v483 = vlaneseq
    %v484 = vshrl.u32 %v483, 7
    %v485 = vsub.s32 0, %v484
    %v486 = vrot.slane %v166, %v485
    %v487 = vlaneseq
    %v488 = vshrl.u32 %v487, 7
    %v489 = vsub.s32 1, %v488
    %v490 = vrot.slane %v166, %v489
    %v491 = vlaneseq
    %v492 = vshrl.u32 %v491, 7
    %v493 = vsub.s32 2, %v492
    %v494 = vrot.slane %v166, %v493
    %v495 = vlaneseq
    %v496 = vshrl.u32 %v495, 7
    %v497 = vsub.s32 3, %v496
    %v498 = vrot.slane %v166, %v497
    %v499 = vlaneseq
    %v500 = vshrl.u32 %v499, 7
    %v501 = vsub.s32 4, %v500
    %v502 = vrot.slane %v166, %v501
    %v503 = vlaneseq
    %v504 = vshrl.u32 %v503, 7
    %v505 = vsub.s32 5, %v504
    %v506 = vrot.slane %v166, %v505
    %v507 = vlaneseq
    %v508 = vshrl.u32 %v507, 7
    %v509 = vsub.s32 6, %v508
    %v510 = vrot.slane %v166, %v509
    %v511 = vlaneseq
    %v512 = vshrl.u32 %v511, 7
    %v513 = vsub.s32 7, %v512
    %v514 = vrot.slane %v166, %v513
    %v523 = vmul.f32 %v474, %v486
    %v524 = vmul.f32 %v475, %v490
    %v525 = vmul.f32 %v476, %v494
    %v526 = vmul.f32 %v477, %v498
    %v527 = vmul.f32 %v478, %v502
    %v528 = vmul.f32 %v479, %v506
    %v529 = vmul.f32 %v480, %v510
    %v530 = vmul.f32 %v481, %v514
    %v531 = vmul.f32 %v62, %v63
    %v532 = vsel %vm72, %v531, 0.0
    %533 = vadd.xlane.f32.xlu0 %v532
    %v534 = vpop.xlane.xlu0 %533
    %v535 = vmul.f32 %v534, %v166
    %v536 = vmul.f32 %v535, %v172
    %v537 = vrcp.pop 0.07
    %v538 = vmul.f32 %v536, %v537
    %v539 = vmul.f32 %v538, 1.442695
    %v540 = vpow.pop %v539
    %v541 = vmul.f32 %v344, %v537
    %v542 = vmul.f32 %v345, %v537
    %v543 = vmul.f32 %v346, %v537
    %v544 = vmul.f32 %v347, %v537
    %v545 = vmul.f32 %v348, %v537
    %v546 = vmul.f32 %v349, %v537
    %v547 = vmul.f32 %v350, %v537
    %v548 = vmul.f32 %v351, %v537
    %v549 = vmul.f32 %v541, 1.442695
    %v550 = vpow.pop %v549
    %v551 = vmul.f32 %v542, 1.442695
    %v552 = vpow.pop %v551
    %v553 = vmul.f32 %v543, 1.442695
    %v554 = vpow.pop %v553
    %v555 = vmul.f32 %v544, 1.442695
    %v556 = vpow.pop %v555
    %v557 = vmul.f32 %v545, 1.442695
    %v558 = vpow.pop %v557
    %v559 = vmul.f32 %v546, 1.442695
    %v560 = vpow.pop %v559
    %v561 = vmul.f32 %v547, 1.442695
    %v562 = vpow.pop %v561
    %v563 = vmul.f32 %v548, 1.442695
    %v564 = vpow.pop %v563
    %573 = vset.pattern.permute.xlu0 0
    %574 = vperm.xlu0 %573, %v550
    %v575 = vpop.permute.xlu0 %574
    %576 = vset.pattern.permute.xlu0 0
    %577 = vperm.xlu0 %576, %v552
    %v578 = vpop.permute.xlu0 %577
    %579 = vset.pattern.permute.xlu0 0
    %580 = vperm.xlu0 %579, %v554
    %v581 = vpop.permute.xlu0 %580
    %582 = vset.pattern.permute.xlu0 0
    %583 = vperm.xlu0 %582, %v556
    %v584 = vpop.permute.xlu0 %583
    %585 = vset.pattern.permute.xlu0 0
    %586 = vperm.xlu0 %585, %v558
    %v587 = vpop.permute.xlu0 %586
    %588 = vset.pattern.permute.xlu0 0
    %589 = vperm.xlu0 %588, %v560
    %v590 = vpop.permute.xlu0 %589
    %591 = vset.pattern.permute.xlu0 0
    %592 = vperm.xlu0 %591, %v562
    %v593 = vpop.permute.xlu0 %592
    %594 = vset.pattern.permute.xlu0 0
    %595 = vperm.xlu0 %594, %v564
    %v596 = vpop.permute.xlu0 %595
    %v597 = vlaneseq
    %v598 = vand.u32 %v597, 127
    %v599 = vlaneseq
    %v600 = vshrl.u32 %v599, 7
    %v601 = vsub.s32 %v598, %v600
    %v602 = vrot.slane %v575, %v601
    %v603 = vlaneseq
    %v604 = vshrl.u32 %v603, 7
    %v605 = vsub.s32 %v598, %v604
    %v606 = vrot.slane %v578, %v605
    %v607 = vlaneseq
    %v608 = vshrl.u32 %v607, 7
    %v609 = vsub.s32 %v598, %v608
    %v610 = vrot.slane %v581, %v609
    %v611 = vlaneseq
    %v612 = vshrl.u32 %v611, 7
    %v613 = vsub.s32 %v598, %v612
    %v614 = vrot.slane %v584, %v613
    %v615 = vlaneseq
    %v616 = vshrl.u32 %v615, 7
    %v617 = vsub.s32 %v598, %v616
    %v618 = vrot.slane %v587, %v617
    %v619 = vlaneseq
    %v620 = vshrl.u32 %v619, 7
    %v621 = vsub.s32 %v598, %v620
    %v622 = vrot.slane %v590, %v621
    %v623 = vlaneseq
    %v624 = vshrl.u32 %v623, 7
    %v625 = vsub.s32 %v598, %v624
    %v626 = vrot.slane %v593, %v625
    %v627 = vlaneseq
    %v628 = vshrl.u32 %v627, 7
    %v629 = vsub.s32 %v598, %v628
    %v630 = vrot.slane %v596, %v629
    %vm631 = vcmask 1041409
    %v632 = vsel %vm631, %v606, %v602
    %vm633 = vcmask 1042434
    %v634 = vsel %vm633, %v610, %v632
    %vm635 = vcmask 1043459
    %v636 = vsel %vm635, %v614, %v634
    %vm637 = vcmask 1044484
    %v638 = vsel %vm637, %v618, %v636
    %vm639 = vcmask 1045509
    %v640 = vsel %vm639, %v622, %v638
    %vm641 = vcmask 1046534
    %v642 = vsel %vm641, %v626, %v640
    %vm643 = vcmask 1047559
    %v644 = vsel %vm643, %v630, %v642
    %vm646 = vcmask 64512
    %v647 = vsel %vm646, %v644, 0.0
    %648 = vadd.xlane.f32.xlu0 %v647
    %v649 = vpop.xlane.xlu0 %648
    %v650 = vsub.f32 %v649, %v540
    %v651 = vmul.f32 %v523, %v537
    %v652 = vmul.f32 %v524, %v537
    %v653 = vmul.f32 %v525, %v537
    %v654 = vmul.f32 %v526, %v537
    %v655 = vmul.f32 %v527, %v537
    %v656 = vmul.f32 %v528, %v537
    %v657 = vmul.f32 %v529, %v537
    %v658 = vmul.f32 %v530, %v537
    %v659 = vmul.f32 %v651, 1.442695
    %v660 = vpow.pop %v659
    %v661 = vmul.f32 %v652, 1.442695
    %v662 = vpow.pop %v661
    %v663 = vmul.f32 %v653, 1.442695
    %v664 = vpow.pop %v663
    %v665 = vmul.f32 %v654, 1.442695
    %v666 = vpow.pop %v665
    %v667 = vmul.f32 %v655, 1.442695
    %v668 = vpow.pop %v667
    %v669 = vmul.f32 %v656, 1.442695
    %v670 = vpow.pop %v669
    %v671 = vmul.f32 %v657, 1.442695
    %v672 = vpow.pop %v671
    %v673 = vmul.f32 %v658, 1.442695
    %v674 = vpow.pop %v673
    %683 = vset.pattern.permute.xlu0 0
    %684 = vperm.xlu0 %683, %v660
    %v685 = vpop.permute.xlu0 %684
    %686 = vset.pattern.permute.xlu0 0
    %687 = vperm.xlu0 %686, %v662
    %v688 = vpop.permute.xlu0 %687
    %689 = vset.pattern.permute.xlu0 0
    %690 = vperm.xlu0 %689, %v664
    %v691 = vpop.permute.xlu0 %690
    %692 = vset.pattern.permute.xlu0 0
    %693 = vperm.xlu0 %692, %v666
    %v694 = vpop.permute.xlu0 %693
    %695 = vset.pattern.permute.xlu0 0
    %696 = vperm.xlu0 %695, %v668
    %v697 = vpop.permute.xlu0 %696
    %698 = vset.pattern.permute.xlu0 0
    %699 = vperm.xlu0 %698, %v670
    %v700 = vpop.permute.xlu0 %699
    %701 = vset.pattern.permute.xlu0 0
    %702 = vperm.xlu0 %701, %v672
    %v703 = vpop.permute.xlu0 %702
    %704 = vset.pattern.permute.xlu0 0
    %705 = vperm.xlu0 %704, %v674
    %v706 = vpop.permute.xlu0 %705
    %v707 = vlaneseq
    %v708 = vshrl.u32 %v707, 7
    %v709 = vsub.s32 %v598, %v708
    %v710 = vrot.slane %v685, %v709
    %v711 = vlaneseq
    %v712 = vshrl.u32 %v711, 7
    %v713 = vsub.s32 %v598, %v712
    %v714 = vrot.slane %v688, %v713
    %v715 = vlaneseq
    %v716 = vshrl.u32 %v715, 7
    %v717 = vsub.s32 %v598, %v716
    %v718 = vrot.slane %v691, %v717
    %v719 = vlaneseq
    %v720 = vshrl.u32 %v719, 7
    %v721 = vsub.s32 %v598, %v720
    %v722 = vrot.slane %v694, %v721
    %v723 = vlaneseq
    %v724 = vshrl.u32 %v723, 7
    %v725 = vsub.s32 %v598, %v724
    %v726 = vrot.slane %v697, %v725
    %v727 = vlaneseq
    %v728 = vshrl.u32 %v727, 7
    %v729 = vsub.s32 %v598, %v728
    %v730 = vrot.slane %v700, %v729
    %v731 = vlaneseq
    %v732 = vshrl.u32 %v731, 7
    %v733 = vsub.s32 %v598, %v732
    %v734 = vrot.slane %v703, %v733
    %v735 = vlaneseq
    %v736 = vshrl.u32 %v735, 7
    %v737 = vsub.s32 %v598, %v736
    %v738 = vrot.slane %v706, %v737
    %v739 = vsel %vm631, %v714, %v710
    %v740 = vsel %vm633, %v718, %v739
    %v741 = vsel %vm635, %v722, %v740
    %v742 = vsel %vm637, %v726, %v741
    %v743 = vsel %vm639, %v730, %v742
    %v744 = vsel %vm641, %v734, %v743
    %v745 = vsel %vm643, %v738, %v744
    %v747 = vsel %vm646, %v745, 0.0
    %748 = vadd.xlane.f32.xlu0 %v747
    %v749 = vpop.xlane.xlu0 %748
    %v750 = vsub.f32 %v749, %v540
    %v751 = vmul.f32 %v650, %v750
    %v752 = vlog2.pop %v751
    %v753 = vmul.f32 %v752, 0.6931472
    %v754 = vmul.f32 %v536, 2.0
    %v755 = vmul.f32 %v754, %v537
    %v756 = vsub.f32 %v753, %v755
    %v757 = vmul.f32 %v756, 0.5
    %s758 = smul.u32 0, 8
    %v759 = vlaneseq
    %v760 = vshrl.u32 %v759, 7
    %v761 = vstv %s758
    %v762 = vadd.s32 %v761, %v760
    %vm763 = vcmp.lt.s32.totalorder %v762, 2
    %v764 = vsel %vm763, %v757, 0.0
    %vm765 = vcmask 7168
    %v766 = vsel %vm765, %v764, 0.0
    %767 = vadd.xlane.f32.xlu0 %v766
    %v768 = vpop.xlane.xlu0 %767
    %v769 = vrot.slane %v768, 4
    %v770 = vadd.f32 %v768, %v769
    %v771 = vrot.slane %v770, 2
    %v772 = vadd.f32 %v770, %v771
    %v773 = vrot.slane %v772, 1
    %v774 = vadd.f32 %v772, %v773
    %s775 = vtos %v774
    %v776 = vstv %s775
    %777 = vst [vmem:[#allocation7] sm:$0xff] %v776
    // Predicated region
    $region26: #{tpu_custom_call.1} parent=1 // pred_check
      _
    $region27: #{tpu_custom_call.1} parent=1 // pred_check_branch
      %779 = sbr.rel (0) target = $region29
    $region28: #{tpu_custom_call.1} parent=1 // pred_region
      %s781 = ssub.s32 128, 128
      %782 = vsyncadd [#allocation4], %s781
      %s784 = sshll.u32 [#allocation7], 4
      %s785 = int_to_ptr.vmem [resolvable:$true] %s784
      %787 = dma.vmem_to_hbm [thread:$0]  %s785, 128, %s4, [#allocation4]
    $region29: #{tpu_custom_call.1} parent=1 // pred_fallthru
      _
    // Predicated region
    $region30: #{tpu_custom_call.1} parent=1 // pred_check
      _
    $region31: #{tpu_custom_call.1} parent=1 // pred_check_branch
      %789 = sbr.rel (0) target = $region33
    $region32: #{tpu_custom_call.1} parent=1 // pred_region
      %790 = dma.done [#allocation4], 128
    $region33: #{tpu_custom_call.1} parent=1 // pred_fallthru
      _
    %791 = vsyncpa [#allocation3], 1
    %792 = vsyncpa [#allocation6], 1
    %793 = vsyncpa [#allocation4], 1

</llo_original>
